<compile_context>
chip_gen: v6e
topology: v6e:2x2x1
jax: 0.10.0
libtpu: 0.0.40
codegen_flags: <defaults>
</compile_context>

<pallas_src>
import functools
import math

import numpy as np
import jax
import jax.numpy as jnp
from jax.experimental import pallas as pl
from jax.experimental.pallas import tpu as pltpu


# ----------------------------- schedule (glue, numpy) -----------------------------
def make_beta_schedule_linear(n_timestep, linear_start=1e-4, linear_end=2e-2):
    return np.linspace(linear_start, linear_end, n_timestep, dtype=np.float64)


def _pick_hw_tile(hw, max_lanes=2048):
    """Largest multiple of 128 that divides hw and is <= max_lanes (or hw itself if small)."""
    if hw <= max_lanes:
        return hw
    t = (max_lanes // 128) * 128
    while t >= 128:
        if hw % t == 0:
            return t
        t -= 128
    return hw


# ----------------------------- Pallas kernel -----------------------------
def diffusion_loss_kernel(csac_ref, s_ref,               # (B,) f32 SMEM scalar-prefetch operands
                          lr_ref, hr_ref, nz_ref,        # (C, T) VMEM tiles of LR / HR / noise
                          wlr_ref, wx_ref,               # (C, C) VMEM 1x1-conv weights
                          bias_ref, nsv_ref,             # (C, 1) VMEM conditioning params
                          out_ref,                       # (1, 128) VMEM per-batch loss block
                          acc_ref):                      # (1, 128) f32 VMEM accumulator (splat)
    b = pl.program_id(0)
    t = pl.program_id(1)

    @pl.when(t == 0)
    def _():
        acc_ref[...] = jnp.zeros_like(acc_ref)

    # Per-batch scalars from SMEM (no lane-dense materialization in HBM).
    c = csac_ref[b]            # continuous_sqrt_alpha_cumprod
    s = s_ref[b]               # sqrt(1 - c^2)

    hr = hr_ref[...]
    nz = nz_ref[...]

    # --- q_sample ---
    x_noisy = c * hr + s * nz                                           # (C, T)

    # --- denoise_fn: two accumulating MXU dots over the channel contraction (no concat copy) ---
    pred = jnp.dot(wlr_ref[...], lr_ref[...], preferred_element_type=jnp.float32)
    pred = pred + jnp.dot(wx_ref[...], x_noisy, preferred_element_type=jnp.float32)
    pred = pred + bias_ref[...] + c * nsv_ref[...]                      # noise-level conditioning

    # --- l2 loss: per-tile partial sum, accumulated across the HW-tile (reduction) axis ---
    diff = nz - pred
    acc_ref[...] += jnp.broadcast_to(jnp.sum(diff * diff), acc_ref.shape)

    @pl.when(t == pl.num_programs(1) - 1)
    def _():
        out_ref[...] = acc_ref[...]     # every lane holds this batch's sum of squared errors


# ----------------------------- wrapper -----------------------------
def gaussian_diffusion_forward(hr_nchw, lr_nchw, noise_nchw, csac, params, hw_tile=None):
    """hr/lr/noise: (B, C, H, W) fp32 NCHW; csac: (B,) fp32. Returns scalar l2 loss."""
    B, C, H, W = hr_nchw.shape
    HW = H * W
    w_lr, w_x, bias, nsv = params

    if hw_tile is None:
        hw_tile = _pick_hw_tile(HW)
    assert HW % hw_tile == 0 and (hw_tile % 128 == 0 or hw_tile == HW)
    n_hw_tiles = HW // hw_tile

    # NCHW kept: only a free reshape (C already on the sublane axis, HW on the lane axis).
    hr3 = hr_nchw.reshape(B, C, HW).astype(jnp.float32)
    lr3 = lr_nchw.reshape(B, C, HW).astype(jnp.float32)
    nz3 = noise_nchw.reshape(B, C, HW).astype(jnp.float32)

    # Per-batch scalars for SMEM scalar prefetch (B floats; no lane-dense arrays).
    csac_f = csac.astype(jnp.float32)
    s_f = jnp.sqrt(jnp.maximum(1.0 - csac_f * csac_f, 0.0))

    img_spec = pl.BlockSpec((pl.Squeezed(), C, hw_tile), lambda b, t, csac, s: (b, 0, t))
    w_spec = pl.BlockSpec((C, C), lambda b, t, csac, s: (0, 0))
    v_spec = pl.BlockSpec((C, 1), lambda b, t, csac, s: (0, 0))
    out_spec = pl.BlockSpec((pl.Squeezed(), 1, 128), lambda b, t, csac, s: (b, 0, 0))

    grid_spec = pltpu.PrefetchScalarGridSpec(
        num_scalar_prefetch=2,
        grid=(B, n_hw_tiles),                       # reduction (HW-tile) axis last
        in_specs=[img_spec, img_spec, img_spec, w_spec, w_spec, v_spec, v_spec],
        out_specs=out_spec,
        scratch_shapes=[pltpu.VMEM((1, 128), jnp.float32)],
    )

    per_batch = pl.pallas_call(
        diffusion_loss_kernel,
        out_shape=jax.ShapeDtypeStruct((B, 1, 128), jnp.float32),
        grid_spec=grid_spec,
        compiler_params=pltpu.CompilerParams(
            dimension_semantics=("parallel", "arbitrary"),   # batch shards across v7x TCs
            vmem_limit_bytes=32 * 1024 * 1024),              # explicit budget, fits v5e/v6e/v7x
    )(csac_f, s_f, lr3, hr3, nz3,
      w_lr.astype(jnp.float32), w_x.astype(jnp.float32),
      bias.astype(jnp.float32), nsv.astype(jnp.float32))

    # Combine per-batch partial sums (correct under megacore sharding) and normalize -> mean.
    return jnp.sum(per_batch[:, 0, 0]) / (B * C * HW)


# ----------------------------- plain-JAX reference -----------------------------
def reference_forward(hr, lr, noise, csac, params):
    w_lr, w_x, bias, nsv = params
    B, C, H, W = hr.shape
    c = csac.reshape(B, 1, 1, 1)
    x_noisy = c * hr + jnp.sqrt(1.0 - c * c) * noise
    lrf = lr.reshape(B, C, H * W)
    xf = x_noisy.reshape(B, C, H * W)
    pred = (jnp.einsum('ij,bjk->bik', w_lr, lrf)
            + jnp.einsum('ij,bjk->bik', w_x, xf)
            + bias[None]
            + csac.reshape(B, 1, 1) * nsv[None])
    return jnp.mean((noise.reshape(B, C, H * W) - pred) ** 2)


# ----------------------------- main -----------------------------
if __name__ == "__main__":
    B, C, H, W = 2, 4, 16, 16
    num_timesteps = 100

    # noise schedule (set_new_noise_schedule, schedule_type='linear')
    betas = make_beta_schedule_linear(num_timesteps)
    alphas_cumprod = np.cumprod(1.0 - betas)
    sqrt_alphas_cumprod_prev = np.sqrt(np.append(1.0, alphas_cumprod)).astype(np.float32)

    key = jax.random.PRNGKey(0)
    k_hr, k_lr, k_w1, k_w2, k_b, k_nsv, k_t, k_u, k_n = jax.random.split(key, 9)

    # inputs: x_in = {'HR': ..., 'LR': ...}, both NCHW
    hr = jax.random.normal(k_hr, (B, C, H, W), jnp.float32)
    lr = jax.random.normal(k_lr, (B, C, H, W), jnp.float32)

    # deterministic synthetic denoise_fn parameters (1x1 conv 2C->C + noise-level embedding)
    w_lr = jax.random.normal(k_w1, (C, C), jnp.float32) / math.sqrt(2 * C)
    w_x = jax.random.normal(k_w2, (C, C), jnp.float32) / math.sqrt(2 * C)
    bias = jax.random.normal(k_b, (C, 1), jnp.float32) * 0.01
    nsv = jax.random.normal(k_nsv, (C, 1), jnp.float32) * 0.1
    params = (w_lr, w_x, bias, nsv)

    # p_losses randomness (glue): t ~ U{1..T}, csac ~ U(sqrt_acp_prev[t-1], sqrt_acp_prev[t]), noise ~ N(0,1)
    t = int(jax.random.randint(k_t, (), 1, num_timesteps + 1))
    lo = float(sqrt_alphas_cumprod_prev[t - 1])
    hi = float(sqrt_alphas_cumprod_prev[t])
    u = jax.random.uniform(k_u, (B,), jnp.float32)
    csac = (lo + u * (hi - lo)).astype(jnp.float32)
    noise = jax.random.normal(k_n, (B, C, H, W), jnp.float32)

    # hw_tile=128 at this toy size so the HW-tile reduction axis (and accumulator) is exercised.
    loss = gaussian_diffusion_forward(hr, lr, noise, csac, params, hw_tile=128)
    loss = jax.block_until_ready(loss)

    ref = jax.block_until_ready(reference_forward(hr, lr, noise, csac, params))
    np.testing.assert_allclose(np.asarray(loss), np.asarray(ref), rtol=1e-4, atol=1e-5)

    print("KERNEL_OK")
</pallas_src>

<mosaic_0001>
module attributes {stable_mosaic.version = 11 : i64} {
  func.func @diffusion_loss_kernel(%arg0: i32, %arg1: i32, %arg2: memref<2xf32, #tpu.memory_space<smem>>, %arg3: memref<2xf32, #tpu.memory_space<smem>>, %arg4: memref<1x4x128xf32, #tpu.memory_space<vmem>>, %arg5: memref<1x4x128xf32, #tpu.memory_space<vmem>>, %arg6: memref<1x4x128xf32, #tpu.memory_space<vmem>>, %arg7: memref<4x4xf32, #tpu.memory_space<vmem>>, %arg8: memref<4x4xf32, #tpu.memory_space<vmem>>, %arg9: memref<4x1xf32, #tpu.memory_space<vmem>>, %arg10: memref<4x1xf32, #tpu.memory_space<vmem>>, %arg11: memref<1x1x128xf32, #tpu.memory_space<vmem>>, %arg12: memref<1x128xf32, #tpu.memory_space<vmem>>) attributes {dimension_semantics = [#tpu.dimension_semantics<parallel>, #tpu.dimension_semantics<arbitrary>], iteration_bounds = array<i64: 2, 2>, scalar_prefetch = 2 : i64, scratch_operands = 1 : i64, tpu.core_type = #tpu.core_type<tc>, window_params = [{transform_indices = @transform_0, window_bounds = array<i64: 1, 4, 128>}, {transform_indices = @transform_1, window_bounds = array<i64: 1, 4, 128>}, {transform_indices = @transform_2, window_bounds = array<i64: 1, 4, 128>}, {pipeline_mode = #tpu.pipeline_mode<synchronous>, transform_indices = @transform_3, window_bounds = array<i64: 4, 4>}, {pipeline_mode = #tpu.pipeline_mode<synchronous>, transform_indices = @transform_4, window_bounds = array<i64: 4, 4>}, {pipeline_mode = #tpu.pipeline_mode<synchronous>, transform_indices = @transform_5, window_bounds = array<i64: 4, 1>}, {pipeline_mode = #tpu.pipeline_mode<synchronous>, transform_indices = @transform_6, window_bounds = array<i64: 4, 1>}, {transform_indices = @transform_7, window_bounds = array<i64: 1, 1, 128>}]} {
    %c0_i32 = arith.constant 0 : i32
    %0 = arith.cmpi eq, %arg1, %c0_i32 : i32
    %1 = arith.extui %0 : i1 to i32
    %c0_i32_0 = arith.constant 0 : i32
    %2 = arith.cmpi ne, %1, %c0_i32_0 : i32
    scf.if %2 {
      %cst_24 = arith.constant 0.000000e+00 : f32
      %44 = vector.broadcast %cst_24 : f32 to vector<1x128xf32>
      %c0_25 = arith.constant 0 : index
      %c0_26 = arith.constant 0 : index
      %45 = vector.load %arg12[%c0_25, %c0_26] : memref<1x128xf32, #tpu.memory_space<vmem>>, vector<1x128xf32>
      tpu.vector_store %arg12[%c0_25, %c0_26], %44 {strides = array<i32>} : memref<1x128xf32, #tpu.memory_space<vmem>>, vector<1x128xf32>,
    } else {
    }
    %3 = arith.index_cast %arg0 : i32 to index
    %4 = memref.load %arg2[%3] : memref<2xf32, #tpu.memory_space<smem>>
    %5 = arith.index_cast %arg0 : i32 to index
    %6 = memref.load %arg3[%5] : memref<2xf32, #tpu.memory_space<smem>>
    %c0 = arith.constant 0 : index
    %c0_1 = arith.constant 0 : index
    %c0_2 = arith.constant 0 : index
    %7 = vector.load %arg5[%c0, %c0_1, %c0_2] : memref<1x4x128xf32, #tpu.memory_space<vmem>>, vector<1x4x128xf32>
    %8 = vector.shape_cast %7 : vector<1x4x128xf32> to vector<4x128xf32>
    %c0_3 = arith.constant 0 : index
    %c0_4 = arith.constant 0 : index
    %c0_5 = arith.constant 0 : index
    %9 = vector.load %arg6[%c0_3, %c0_4, %c0_5] : memref<1x4x128xf32, #tpu.memory_space<vmem>>, vector<1x4x128xf32>
    %10 = vector.shape_cast %9 : vector<1x4x128xf32> to vector<4x128xf32>
    %11 = vector.broadcast %4 : f32 to vector<4x128xf32>
    %12 = arith.mulf %11, %8 : vector<4x128xf32>
    %13 = vector.broadcast %6 : f32 to vector<4x128xf32>
    %14 = arith.mulf %13, %10 : vector<4x128xf32>
    %15 = arith.addf %12, %14 : vector<4x128xf32>
    %c0_6 = arith.constant 0 : index
    %c0_7 = arith.constant 0 : index
    %16 = vector.load %arg7[%c0_6, %c0_7] : memref<4x4xf32, #tpu.memory_space<vmem>>, vector<4x4xf32>
    %c0_8 = arith.constant 0 : index
    %c0_9 = arith.constant 0 : index
    %c0_10 = arith.constant 0 : index
    %17 = vector.load %arg4[%c0_8, %c0_9, %c0_10] : memref<1x4x128xf32, #tpu.memory_space<vmem>>, vector<1x4x128xf32>
    %18 = vector.shape_cast %17 : vector<1x4x128xf32> to vector<4x128xf32>
    %cst = arith.constant dense<0.000000e+00> : vector<4x128xf32>
    %19 = tpu.matmul %16, %18, %cst {dimension_numbers = #tpu.dot_dimension_numbers<[1], [0], [0], [1], [0, 0, 1, 1], [], []>} : vector<4x4xf32>, vector<4x128xf32>, vector<4x128xf32> -> vector<4x128xf32>
    %c0_11 = arith.constant 0 : index
    %c0_12 = arith.constant 0 : index
    %20 = vector.load %arg8[%c0_11, %c0_12] : memref<4x4xf32, #tpu.memory_space<vmem>>, vector<4x4xf32>
    %cst_13 = arith.constant dense<0.000000e+00> : vector<4x128xf32>
    %21 = tpu.matmul %20, %15, %cst_13 {dimension_numbers = #tpu.dot_dimension_numbers<[1], [0], [0], [1], [0, 0, 1, 1], [], []>} : vector<4x4xf32>, vector<4x128xf32>, vector<4x128xf32> -> vector<4x128xf32>
    %22 = arith.addf %19, %21 : vector<4x128xf32>
    %c0_14 = arith.constant 0 : index
    %c0_15 = arith.constant 0 : index
    %23 = vector.load %arg9[%c0_14, %c0_15] : memref<4x1xf32, #tpu.memory_space<vmem>>, vector<4x1xf32>
    %24 = vector.broadcast %23 : vector<4x1xf32> to vector<4x128xf32>
    %25 = arith.addf %22, %24 : vector<4x128xf32>
    %c0_16 = arith.constant 0 : index
    %c0_17 = arith.constant 0 : index
    %26 = vector.load %arg10[%c0_16, %c0_17] : memref<4x1xf32, #tpu.memory_space<vmem>>, vector<4x1xf32>
    %27 = vector.broadcast %4 : f32 to vector<4x1xf32>
    %28 = arith.mulf %27, %26 : vector<4x1xf32>
    %29 = vector.broadcast %28 : vector<4x1xf32> to vector<4x128xf32>
    %30 = arith.addf %25, %29 : vector<4x128xf32>
    %31 = arith.subf %10, %30 : vector<4x128xf32>
    %c0_18 = arith.constant 0 : index
    %c0_19 = arith.constant 0 : index
    %32 = vector.load %arg12[%c0_18, %c0_19] : memref<1x128xf32, #tpu.memory_space<vmem>>, vector<1x128xf32>
    %33 = arith.mulf %31, %31 : vector<4x128xf32>
    %34 = vector.shape_cast %33 : vector<4x128xf32> to vector<1x4x128xf32>
    %cst_20 = arith.constant dense<0.000000e+00> : vector<1xf32>
    %35 = vector.multi_reduction <add>, %34, %cst_20 [1, 2] : vector<1x4x128xf32> to vector<1xf32>
    %36 = vector.shape_cast %35 : vector<1xf32> to vector<1x1x1xf32>
    %37 = vector.extract %36[0, 0, 0] : f32 from vector<1x1x1xf32>
    %38 = vector.broadcast %37 : f32 to vector<1x128xf32>
    %39 = arith.addf %32, %38 : vector<1x128xf32>
    %c0_21 = arith.constant 0 : index
    %c0_22 = arith.constant 0 : index
    %40 = vector.load %arg12[%c0_21, %c0_22] : memref<1x128xf32, #tpu.memory_space<vmem>>, vector<1x128xf32>
    tpu.vector_store %arg12[%c0_21, %c0_22], %39 {strides = array<i32>} : memref<1x128xf32, #tpu.memory_space<vmem>>, vector<1x128xf32>,
    %c1_i32 = arith.constant 1 : i32
    %41 = arith.cmpi eq, %arg1, %c1_i32 : i32
    %42 = arith.extui %41 : i1 to i32
    %c0_i32_23 = arith.constant 0 : i32
    %43 = arith.cmpi ne, %42, %c0_i32_23 : i32
    scf.if %43 {
      %c0_24 = arith.constant 0 : index
      %c0_25 = arith.constant 0 : index
      %44 = vector.load %arg12[%c0_24, %c0_25] : memref<1x128xf32, #tpu.memory_space<vmem>>, vector<1x128xf32>
      %c0_26 = arith.constant 0 : index
      %c0_27 = arith.constant 0 : index
      %c0_28 = arith.constant 0 : index
      %45 = vector.load %arg11[%c0_26, %c0_27, %c0_28] : memref<1x1x128xf32, #tpu.memory_space<vmem>>, vector<1x1x128xf32>
      %46 = vector.shape_cast %45 : vector<1x1x128xf32> to vector<1x128xf32>
      %47 = vector.shape_cast %44 : vector<1x128xf32> to vector<1x1x128xf32>
      tpu.vector_store %arg11[%c0_26, %c0_27, %c0_28], %47 {strides = array<i32>} : memref<1x1x128xf32, #tpu.memory_space<vmem>>, vector<1x1x128xf32>,
    } else {
    }
    return
  }
  func.func @transform_0(%arg0: i32, %arg1: i32, %arg2: memref<2xf32, #tpu.memory_space<smem>>, %arg3: memref<2xf32, #tpu.memory_space<smem>>) -> (i32, i32, i32) {
    %c0_i32 = arith.constant 0 : i32
    %c0_i32_0 = arith.constant 0 : i32
    return %arg0, %c0_i32, %arg1 : i32, i32, i32
  }
  func.func @transform_1(%arg0: i32, %arg1: i32, %arg2: memref<2xf32, #tpu.memory_space<smem>>, %arg3: memref<2xf32, #tpu.memory_space<smem>>) -> (i32, i32, i32) {
    %c0_i32 = arith.constant 0 : i32
    %c0_i32_0 = arith.constant 0 : i32
    return %arg0, %c0_i32, %arg1 : i32, i32, i32
  }
  func.func @transform_2(%arg0: i32, %arg1: i32, %arg2: memref<2xf32, #tpu.memory_space<smem>>, %arg3: memref<2xf32, #tpu.memory_space<smem>>) -> (i32, i32, i32) {
    %c0_i32 = arith.constant 0 : i32
    %c0_i32_0 = arith.constant 0 : i32
    return %arg0, %c0_i32, %arg1 : i32, i32, i32
  }
  func.func @transform_3(%arg0: i32, %arg1: i32, %arg2: memref<2xf32, #tpu.memory_space<smem>>, %arg3: memref<2xf32, #tpu.memory_space<smem>>) -> (i32, i32) {
    %c0_i32 = arith.constant 0 : i32
    %c0_i32_0 = arith.constant 0 : i32
    %c0_i32_1 = arith.constant 0 : i32
    return %c0_i32, %c0_i32_0 : i32, i32
  }
  func.func @transform_4(%arg0: i32, %arg1: i32, %arg2: memref<2xf32, #tpu.memory_space<smem>>, %arg3: memref<2xf32, #tpu.memory_space<smem>>) -> (i32, i32) {
    %c0_i32 = arith.constant 0 : i32
    %c0_i32_0 = arith.constant 0 : i32
    %c0_i32_1 = arith.constant 0 : i32
    return %c0_i32, %c0_i32_0 : i32, i32
  }
  func.func @transform_5(%arg0: i32, %arg1: i32, %arg2: memref<2xf32, #tpu.memory_space<smem>>, %arg3: memref<2xf32, #tpu.memory_space<smem>>) -> (i32, i32) {
    %c0_i32 = arith.constant 0 : i32
    %c0_i32_0 = arith.constant 0 : i32
    %c0_i32_1 = arith.constant 0 : i32
    return %c0_i32, %c0_i32_0 : i32, i32
  }
  func.func @transform_6(%arg0: i32, %arg1: i32, %arg2: memref<2xf32, #tpu.memory_space<smem>>, %arg3: memref<2xf32, #tpu.memory_space<smem>>) -> (i32, i32) {
    %c0_i32 = arith.constant 0 : i32
    %c0_i32_0 = arith.constant 0 : i32
    %c0_i32_1 = arith.constant 0 : i32
    return %c0_i32, %c0_i32_0 : i32, i32
  }
  func.func @transform_7(%arg0: i32, %arg1: i32, %arg2: memref<2xf32, #tpu.memory_space<smem>>, %arg3: memref<2xf32, #tpu.memory_space<smem>>) -> (i32, i32, i32) {
    %c0_i32 = arith.constant 0 : i32
    %c0_i32_0 = arith.constant 0 : i32
    %c0_i32_1 = arith.constant 0 : i32
    return %arg0, %c0_i32, %c0_i32_0 : i32, i32, i32
  }
}

</mosaic_0001>

<llo_original>
// kernel: tpu_custom_call.1
$region0: #{tpu_custom_call.1}
  #allocation0 [shape = 'u32[]', space=smem, size = 0x4, offset = 0x4, fixed_abs, tag = 'smem constant byte address 0x4 - core index']
  #allocation1 [shape = 'u32[144,128]{1,0:T(1,128)}', space=vmem, size = 0x12000, scoped, tag = 'internal scratch']
  #allocation2 [shape = 'f32[1,128]{1,0:T(1,128)}', space=vmem, size = 0x200, scoped, tag = 'scratch operand']
  #allocation3 [shape = 's32[1]{0}', space=sflag, size = 0x4, scoped, tag = 'scoped memory for tpu_custom_call.1']
  #allocation4 [shape = 'u8[512]{0}', space=smem, size = 0x200, scoped, tag = 'prefetched SMEM operand 0']
  #allocation5 [shape = 'u8[512]{0}', space=smem, size = 0x200, scoped, tag = 'prefetched SMEM operand 1']
  %s0 = inlined_call_operand.hbm [shape: f32[2], index: 0, kind: input, shape index: {}]
  %s1 = inlined_call_operand.hbm [shape: f32[2], index: 1, kind: input, shape index: {}]
  %s2 = inlined_call_operand.hbm [shape: f32[2,4,256], index: 2, kind: input, shape index: {}]
  %s3 = inlined_call_operand.hbm [shape: f32[2,4,256], index: 3, kind: input, shape index: {}]
  %s4 = inlined_call_operand.vmem [shape: f32[2,4,256], index: 4, kind: input, shape index: {}]
  %s5 = inlined_call_operand.hbm [shape: f32[4,4], index: 5, kind: input, shape index: {}]
  %s6 = inlined_call_operand.vmem [shape: f32[4,4], index: 6, kind: input, shape index: {}]
  %s7 = inlined_call_operand.vmem [shape: f32[4,1], index: 7, kind: input, shape index: {}]
  %s8 = inlined_call_operand.vmem [shape: f32[4,1], index: 8, kind: input, shape index: {}]
  %s9 = inlined_call_operand.hbm [shape: f32[2,1,128], index: 9, kind: output, shape index: {}]
  %s10 = sld [smem:[#allocation0]]
  $region81: #{tpu_custom_call.1} parent=0
    _
  %s12 = ssub.s32 1, %s10
  %s13 = scalar_select 0, %s12, %s10
  %15 = dma.hbm_to_smem %s0, 16, [#allocation4], [#allocation3]
  %17 = dma.hbm_to_smem %s1, 16, [#allocation5], [#allocation3]
  %18 = dma.done [#allocation3], 32
  %19 = sfence
  $region1: #{tpu_custom_call.1} parent=0
    #allocation6 [shape = 'u8[4096]{0}', space=vmem, size = 0x1000, scoped, tag = 'input window, operand 2']
    #allocation7 [shape = 's32[2]{0}', space=sflag, size = 0x8, scoped, tag = 'scoped memory for tpu_custom_call.1']
    #allocation8 [shape = 's32[2]{0}', space=sflag, size = 0x8, scoped, tag = 'scoped memory for tpu_custom_call.1']
    #allocation9 [shape = 'u8[4096]{0}', space=vmem, size = 0x1000, scoped, tag = 'input window, operand 3']
    #allocation10 [shape = 's32[2]{0}', space=sflag, size = 0x8, scoped, tag = 'scoped memory for tpu_custom_call.1']
    #allocation11 [shape = 'u8[2048]{0}', space=vmem, size = 0x800, scoped, tag = 'input window, operand 5, single buffered']
    #allocation12 [shape = 'u8[1024]{0}', space=vmem, size = 0x400, scoped, tag = 'output window, operand 0']
    %20 = vsyncpa [#allocation7], 0
    %s21 = scalar_lea.sflag [#allocation7], 1
    %22 = vsyncpa %s21, 0
    %23 = vsyncpa [#allocation10], 0
    %s24 = scalar_lea.sflag [#allocation10], 1
    %25 = vsyncpa %s24, 0
    %26 = vsyncpa [#allocation8], 0
    %s27 = scalar_lea.sflag [#allocation8], 1
    %28 = vsyncpa %s27, 0
    loop: start=0, step=1, limit=6
    $region2: #{tpu_custom_call.1} parent=1 // loop_pre_header
      _
    $region3: #{tpu_custom_call.1} parent=1 // loop_header
      %s30 = sphi 0, %s34
      %p31 = scmp.ge.s32.totalorder %s30, 6
      %s37 = sphi 0, %s49
      %s38 = sphi 0, %s45
      %s39 = sphi 0, %s37
      %s40 = sphi 0, %s38
      %s41 = sphi 0, %s39
      %s42 = sphi 0, %s40
      %s54 = sphi 0, %s56
      %s57 = sphi 0, %s54
      %s58 = sphi 0, %s57
      %s74 = sphi 0, %s58
      %s82 = sphi 0, %s84
      %s85 = sphi 0, %s82
      %s86 = sphi 0, %s85
      %s102 = sphi 0, %s86
      %s110 = sphi 0, %s112
      %s113 = sphi 0, %s110
      %s114 = sphi 0, %s113
      %s130 = sphi 0, %s114
      %s134 = sphi 0, %s134
      %s136 = sphi 0, %s134
      %s137 = sphi 0, %s136
      %s151 = sphi 0, %s137
      %s155 = sphi 0, %s155
      %s157 = sphi 0, %s155
      %s158 = sphi 0, %s157
      %s172 = sphi 0, %s158
      %s176 = sphi 0, %s176
      %s178 = sphi 0, %s176
      %s179 = sphi 0, %s178
      %s193 = sphi 0, %s179
      %s197 = sphi 0, %s197
      %s199 = sphi 0, %s197
      %s200 = sphi 0, %s199
      %s214 = sphi 0, %s200
      %s220 = sphi 0, %s222
      %s223 = sphi 0, %s220
      %s224 = sphi 0, %s223
      %s240 = sphi 0, %s224
    $region4: #{tpu_custom_call.1} parent=1 // loop_header_branch
      %33 = sbr.rel (%p31) target = $region8
    $region5: #{tpu_custom_call.1} parent=1 // loop_body
      %s35 = ssub.s32 %s30, 1
      %s36 = ssub.s32 %s30, 2
      %s43 = sadd.s32 1, %s38
      %p44 = scmp.ge.s32.totalorder %s43, 2
      %s45 = scalar_select %p44, 0, %s43
      %s46 = sadd.s32 1, %s37
      %s47 = scalar_select %p44, %s46, %s37
      %p48 = scmp.ge.s32.totalorder %s47, 2
      %s49 = scalar_select %p48, 0, %s47
      %s50 = ssub.s32 %s37, %s49
      %s51 = ssub.s32 %s38, %s45
      %s52 = sor.u32 %s50, %s51
      %p53 = scmp.eq.s32.totalorder %s52, 0
      %s55 = sadd.s32 %s54, 1
      %s56 = scalar_select %p53, %s54, %s55
      %p59 = pneg %p53
      %p60 = scmp.eq.s32.totalorder %s30, 3
      %p61 = por %p59, %p60
      %p62 = scmp.ne.s32.totalorder %s54, %s57
      %p63 = scmp.eq.s32.totalorder %s30, 0
      %p64 = por %p62, %p63
      %p65 = scmp.ne.s32.totalorder %s54, %s57
      %p66 = scmp.eq.s32.totalorder %s35, 3
      %p67 = por %p65, %p66
      %p68 = scmp.ne.s32.totalorder %s57, %s58
      %p69 = scmp.eq.s32.totalorder %s35, 0
      %p70 = por %p68, %p69
      %p71 = scmp.ne.s32.totalorder %s57, %s58
      %p72 = scmp.eq.s32.totalorder %s36, 3
      %p73 = por %p71, %p72
      %p75 = scmp.ne.s32.totalorder %s58, %s74
      %p76 = scmp.eq.s32.totalorder %s36, 0
      %p77 = por %p75, %p76
      %s78 = ssub.s32 %s37, %s49
      %s79 = ssub.s32 %s38, %s45
      %s80 = sor.u32 %s78, %s79
      %p81 = scmp.eq.s32.totalorder %s80, 0
      %s83 = sadd.s32 %s82, 1
      %s84 = scalar_select %p81, %s82, %s83
      %p87 = pneg %p81
      %p88 = scmp.eq.s32.totalorder %s30, 3
      %p89 = por %p87, %p88
      %p90 = scmp.ne.s32.totalorder %s82, %s85
      %p91 = scmp.eq.s32.totalorder %s30, 0
      %p92 = por %p90, %p91
      %p93 = scmp.ne.s32.totalorder %s82, %s85
      %p94 = scmp.eq.s32.totalorder %s35, 3
      %p95 = por %p93, %p94
      %p96 = scmp.ne.s32.totalorder %s85, %s86
      %p97 = scmp.eq.s32.totalorder %s35, 0
      %p98 = por %p96, %p97
      %p99 = scmp.ne.s32.totalorder %s85, %s86
      %p100 = scmp.eq.s32.totalorder %s36, 3
      %p101 = por %p99, %p100
      %p103 = scmp.ne.s32.totalorder %s86, %s102
      %p104 = scmp.eq.s32.totalorder %s36, 0
      %p105 = por %p103, %p104
      %s106 = ssub.s32 %s37, %s49
      %s107 = ssub.s32 %s38, %s45
      %s108 = sor.u32 %s106, %s107
      %p109 = scmp.eq.s32.totalorder %s108, 0
      %s111 = sadd.s32 %s110, 1
      %s112 = scalar_select %p109, %s110, %s111
      %p115 = pneg %p109
      %p116 = scmp.eq.s32.totalorder %s30, 3
      %p117 = por %p115, %p116
      %p118 = scmp.ne.s32.totalorder %s110, %s113
      %p119 = scmp.eq.s32.totalorder %s30, 0
      %p120 = por %p118, %p119
      %p121 = scmp.ne.s32.totalorder %s110, %s113
      %p122 = scmp.eq.s32.totalorder %s35, 3
      %p123 = por %p121, %p122
      %p124 = scmp.ne.s32.totalorder %s113, %s114
      %p125 = scmp.eq.s32.totalorder %s35, 0
      %p126 = por %p124, %p125
      %p127 = scmp.ne.s32.totalorder %s113, %s114
      %p128 = scmp.eq.s32.totalorder %s36, 3
      %p129 = por %p127, %p128
      %p131 = scmp.ne.s32.totalorder %s114, %s130
      %p132 = scmp.eq.s32.totalorder %s36, 0
      %p133 = por %p131, %p132
      %s135 = sadd.s32 %s134, 1
      %p138 = scmp.eq.s32.totalorder %s30, 3
      %p139 = scmp.ne.s32.totalorder %s134, %s136
      %p140 = scmp.eq.s32.totalorder %s30, 0
      %p141 = por %p139, %p140
      %p142 = scmp.ne.s32.totalorder %s134, %s136
      %p143 = scmp.eq.s32.totalorder %s35, 3
      %p144 = por %p142, %p143
      %p145 = scmp.ne.s32.totalorder %s136, %s137
      %p146 = scmp.eq.s32.totalorder %s35, 0
      %p147 = por %p145, %p146
      %p148 = scmp.ne.s32.totalorder %s136, %s137
      %p149 = scmp.eq.s32.totalorder %s36, 3
      %p150 = por %p148, %p149
      %p152 = scmp.ne.s32.totalorder %s137, %s151
      %p153 = scmp.eq.s32.totalorder %s36, 0
      %p154 = por %p152, %p153
      %s156 = sadd.s32 %s155, 1
      %p159 = scmp.eq.s32.totalorder %s30, 3
      %p160 = scmp.ne.s32.totalorder %s155, %s157
      %p161 = scmp.eq.s32.totalorder %s30, 0
      %p162 = por %p160, %p161
      %p163 = scmp.ne.s32.totalorder %s155, %s157
      %p164 = scmp.eq.s32.totalorder %s35, 3
      %p165 = por %p163, %p164
      %p166 = scmp.ne.s32.totalorder %s157, %s158
      %p167 = scmp.eq.s32.totalorder %s35, 0
      %p168 = por %p166, %p167
      %p169 = scmp.ne.s32.totalorder %s157, %s158
      %p170 = scmp.eq.s32.totalorder %s36, 3
      %p171 = por %p169, %p170
      %p173 = scmp.ne.s32.totalorder %s158, %s172
      %p174 = scmp.eq.s32.totalorder %s36, 0
      %p175 = por %p173, %p174
      %s177 = sadd.s32 %s176, 1
      %p180 = scmp.eq.s32.totalorder %s30, 3
      %p181 = scmp.ne.s32.totalorder %s176, %s178
      %p182 = scmp.eq.s32.totalorder %s30, 0
      %p183 = por %p181, %p182
      %p184 = scmp.ne.s32.totalorder %s176, %s178
      %p185 = scmp.eq.s32.totalorder %s35, 3
      %p186 = por %p184, %p185
      %p187 = scmp.ne.s32.totalorder %s178, %s179
      %p188 = scmp.eq.s32.totalorder %s35, 0
      %p189 = por %p187, %p188
      %p190 = scmp.ne.s32.totalorder %s178, %s179
      %p191 = scmp.eq.s32.totalorder %s36, 3
      %p192 = por %p190, %p191
      %p194 = scmp.ne.s32.totalorder %s179, %s193
      %p195 = scmp.eq.s32.totalorder %s36, 0
      %p196 = por %p194, %p195
      %s198 = sadd.s32 %s197, 1
      %p201 = scmp.eq.s32.totalorder %s30, 3
      %p202 = scmp.ne.s32.totalorder %s197, %s199
      %p203 = scmp.eq.s32.totalorder %s30, 0
      %p204 = por %p202, %p203
      %p205 = scmp.ne.s32.totalorder %s197, %s199
      %p206 = scmp.eq.s32.totalorder %s35, 3
      %p207 = por %p205, %p206
      %p208 = scmp.ne.s32.totalorder %s199, %s200
      %p209 = scmp.eq.s32.totalorder %s35, 0
      %p210 = por %p208, %p209
      %p211 = scmp.ne.s32.totalorder %s199, %s200
      %p212 = scmp.eq.s32.totalorder %s36, 3
      %p213 = por %p211, %p212
      %p215 = scmp.ne.s32.totalorder %s200, %s214
      %p216 = scmp.eq.s32.totalorder %s36, 0
      %p217 = por %p215, %p216
      %s218 = ssub.s32 %s37, %s49
      %p219 = scmp.eq.s32.totalorder %s218, 0
      %s221 = sadd.s32 %s220, 1
      %s222 = scalar_select %p219, %s220, %s221
      %p225 = pneg %p219
      %p226 = scmp.eq.s32.totalorder %s30, 3
      %p227 = por %p225, %p226
      %p228 = scmp.ne.s32.totalorder %s220, %s223
      %p229 = scmp.eq.s32.totalorder %s30, 0
      %p230 = por %p228, %p229
      %p231 = scmp.ne.s32.totalorder %s220, %s223
      %p232 = scmp.eq.s32.totalorder %s35, 3
      %p233 = por %p231, %p232
      %p234 = scmp.ne.s32.totalorder %s223, %s224
      %p235 = scmp.eq.s32.totalorder %s35, 0
      %p236 = por %p234, %p235
      %p237 = scmp.ne.s32.totalorder %s223, %s224
      %p238 = scmp.eq.s32.totalorder %s36, 3
      %p239 = por %p237, %p238
      %p241 = scmp.ne.s32.totalorder %s224, %s240
      %p242 = scmp.eq.s32.totalorder %s36, 0
      %p243 = por %p241, %p242
      %p244 = scmp.le.s32.totalorder 1, %s30
      %p245 = scmp.lt.s32.totalorder %s30, 5
      %p246 = pnand %p244, %p245
      %p247 = pneg %p246
      // Predicated region
      $region9: #{tpu_custom_call.1} parent=5 // pred_check
        _
      $region10: #{tpu_custom_call.1} parent=5 // pred_check_branch
        %249 = sbr.rel (%p246) target = $region12
      $region11: #{tpu_custom_call.1} parent=5 // pred_region
        %s250 = ssub.s32 %s30, 1
        // Predicated region
        $region13: #{tpu_custom_call.1} parent=11 // pred_check
          %p251 = pneg %p147
        $region14: #{tpu_custom_call.1} parent=11 // pred_check_branch
          %253 = sbr.rel (%p251) target = $region16
        $region15: #{tpu_custom_call.1} parent=11 // pred_region
          %s255 = ssub.s32 64, 64
          %256 = vsyncadd [#allocation10], %s255
          %s258 = sshll.u32 [#allocation11], 4
          %s259 = int_to_ptr.vmem [resolvable:$true] %s258
          %261 = dma.hbm_to_vmem [thread:$0]  %s5, 64, %s259, [#allocation10]
        $region16: #{tpu_custom_call.1} parent=11 // pred_fallthru
          _
        // Predicated region
        $region17: #{tpu_custom_call.1} parent=11 // pred_check
          %p262 = pneg %p168
        $region18: #{tpu_custom_call.1} parent=11 // pred_check_branch
          %264 = sbr.rel (%p262) target = $region20
        $region19: #{tpu_custom_call.1} parent=11 // pred_region
          _
        $region20: #{tpu_custom_call.1} parent=11 // pred_fallthru
          _
        // Predicated region
        $region21: #{tpu_custom_call.1} parent=11 // pred_check
          %p265 = pneg %p189
        $region22: #{tpu_custom_call.1} parent=11 // pred_check_branch
          %267 = sbr.rel (%p265) target = $region24
        $region23: #{tpu_custom_call.1} parent=11 // pred_region
          _
        $region24: #{tpu_custom_call.1} parent=11 // pred_fallthru
          _
        // Predicated region
        $region25: #{tpu_custom_call.1} parent=11 // pred_check
          %p268 = pneg %p210
        $region26: #{tpu_custom_call.1} parent=11 // pred_check_branch
          %270 = sbr.rel (%p268) target = $region28
        $region27: #{tpu_custom_call.1} parent=11 // pred_region
          _
        $region28: #{tpu_custom_call.1} parent=11 // pred_fallthru
          _
      $region12: #{tpu_custom_call.1} parent=5 // pred_fallthru
        _
      %p271 = scmp.lt.s32.totalorder %s30, 4
      // Predicated region
      $region29: #{tpu_custom_call.1} parent=5 // pred_check
        %p272 = pneg %p271
      $region30: #{tpu_custom_call.1} parent=5 // pred_check_branch
        %274 = sbr.rel (%p272) target = $region32
      $region31: #{tpu_custom_call.1} parent=5 // pred_region
        // Predicated region
        $region33: #{tpu_custom_call.1} parent=31 // pred_check
          %p275 = pneg %p64
        $region34: #{tpu_custom_call.1} parent=31 // pred_check_branch
          %277 = sbr.rel (%p275) target = $region36
        $region35: #{tpu_custom_call.1} parent=31 // pred_region
          %s278 = sand.u32 %s54, 1
          %s279 = scalar_lea.sflag [#allocation7], %s278
          %s280 = sand.u32 %s54, 1
          %s281 = smul.addr %s280, 4
          %s282 = scalar_lea.vmem [#allocation6], %s281
          %s284 = ssub.s32 64, 64
          %285 = vsyncadd %s279, %s284
          %s286 = smul.addr %s37, 2
          %s287 = sadd.s32 %s38, %s286
          %s288 = smul.addr %s287, 64
          %s289 = scalar_lea.hbm %s2, %s288
          %s291 = sshll.u32 %s282, 4
          %s292 = int_to_ptr.vmem [resolvable:$true] %s291
          %294 = dma.hbm_to_vmem [thread:$0]  %s289, 64, %s292, %s279
        $region36: #{tpu_custom_call.1} parent=31 // pred_fallthru
          _
        // Predicated region
        $region37: #{tpu_custom_call.1} parent=31 // pred_check
          %p295 = pneg %p92
        $region38: #{tpu_custom_call.1} parent=31 // pred_check_branch
          %297 = sbr.rel (%p295) target = $region40
        $region39: #{tpu_custom_call.1} parent=31 // pred_region
          %s298 = sand.u32 %s30, 1
          %s299 = scalar_lea.sflag [#allocation10], %s298
          %s300 = sand.u32 %s82, 1
          %s301 = smul.addr %s300, 4
          %s302 = scalar_lea.vmem [#allocation9], %s301
          %s304 = ssub.s32 64, 64
          %305 = vsyncadd %s299, %s304
          %s306 = smul.addr %s37, 2
          %s307 = sadd.s32 %s38, %s306
          %s308 = smul.addr %s307, 64
          %s309 = scalar_lea.hbm %s3, %s308
          %s311 = sshll.u32 %s302, 4
          %s312 = int_to_ptr.vmem [resolvable:$true] %s311
          %314 = dma.hbm_to_vmem [thread:$0]  %s309, 64, %s312, %s299
        $region40: #{tpu_custom_call.1} parent=31 // pred_fallthru
          _
        // Predicated region
        $region41: #{tpu_custom_call.1} parent=31 // pred_check
          %p315 = pneg %p120
        $region42: #{tpu_custom_call.1} parent=31 // pred_check_branch
          %317 = sbr.rel (%p315) target = $region44
        $region43: #{tpu_custom_call.1} parent=31 // pred_region
          %p318 = scmp.lt.s32.totalorder %s37, 1
          %s319 = scalar_select %p318, %s37, 1
          %p320 = scmp.lt.s32.totalorder %s38, 1
          %s321 = scalar_select %p320, %s38, 1
          %s322 = smul.addr %s319, 2
          %s323 = sadd.s32 %s321, %s322
          %s324 = smul.addr %s323, 4
          %s325 = scalar_lea.vmem %s4, %s324
        $region44: #{tpu_custom_call.1} parent=31 // pred_fallthru
          _
      $region32: #{tpu_custom_call.1} parent=5 // pred_fallthru
        _
      %p326 = scmp.le.s32.totalorder 1, %s30
      %p327 = scmp.lt.s32.totalorder %s30, 5
      %p328 = pnand %p326, %p327
      %p329 = pneg %p328
      // Predicated region
      $region45: #{tpu_custom_call.1} parent=5 // pred_check
        _
      $region46: #{tpu_custom_call.1} parent=5 // pred_check_branch
        %331 = sbr.rel (%p328) target = $region48
      $region47: #{tpu_custom_call.1} parent=5 // pred_region
        %s332 = ssub.s32 %s30, 1
        %s333 = sand.u32 %s57, 1
        %s334 = scalar_lea.sflag [#allocation7], %s333
        %s335 = sand.u32 %s57, 1
        %s336 = smul.addr %s335, 4
        %s337 = scalar_lea.vmem [#allocation6], %s336
        // Predicated region
        $region49: #{tpu_custom_call.1} parent=47 // pred_check
          %p338 = pneg %p70
        $region50: #{tpu_custom_call.1} parent=47 // pred_check_branch
          %340 = sbr.rel (%p338) target = $region52
        $region51: #{tpu_custom_call.1} parent=47 // pred_region
          %341 = dma.done %s334, 64
        $region52: #{tpu_custom_call.1} parent=47 // pred_fallthru
          _
        %s342 = sand.u32 %s35, 1
        %s343 = scalar_lea.sflag [#allocation10], %s342
        %s344 = sand.u32 %s85, 1
        %s345 = smul.addr %s344, 4
        %s346 = scalar_lea.vmem [#allocation9], %s345
        // Predicated region
        $region53: #{tpu_custom_call.1} parent=47 // pred_check
          %p347 = pneg %p98
        $region54: #{tpu_custom_call.1} parent=47 // pred_check_branch
          %349 = sbr.rel (%p347) target = $region56
        $region55: #{tpu_custom_call.1} parent=47 // pred_region
          %350 = dma.done %s343, 64
        $region56: #{tpu_custom_call.1} parent=47 // pred_fallthru
          _
        // Predicated region
        $region57: #{tpu_custom_call.1} parent=47 // pred_check
          %p351 = pneg %p147
        $region58: #{tpu_custom_call.1} parent=47 // pred_check_branch
          %353 = sbr.rel (%p351) target = $region60
        $region59: #{tpu_custom_call.1} parent=47 // pred_region
          %354 = dma.done [#allocation10], 64
        $region60: #{tpu_custom_call.1} parent=47 // pred_fallthru
          _
        %s355 = sand.u32 %s57, 1
        %s356 = scalar_lea.sflag [#allocation7], %s355
        %s357 = sand.u32 %s57, 1
        %s358 = smul.addr %s357, 4
        %s359 = scalar_lea.vmem [#allocation6], %s358
        %p360 = pneg %p70
        %p361 = pneg %p67
        %s362 = sand.u32 %s35, 1
        %s363 = scalar_lea.sflag [#allocation10], %s362
        %s364 = sand.u32 %s85, 1
        %s365 = smul.addr %s364, 4
        %s366 = scalar_lea.vmem [#allocation9], %s365
        %p367 = pneg %p98
        %p368 = pneg %p95
        %p369 = scmp.lt.s32.totalorder %s39, 1
        %s370 = scalar_select %p369, %s39, 1
        %p371 = scmp.lt.s32.totalorder %s40, 1
        %s372 = scalar_select %p371, %s40, 1
        %s373 = smul.addr %s370, 2
        %s374 = sadd.s32 %s372, %s373
        %s375 = smul.addr %s374, 4
        %s376 = scalar_lea.vmem %s4, %s375
        %p377 = pneg %p126
        %p378 = pneg %p123
        %p379 = pneg %p147
        %p380 = pneg %p144
        %p381 = pneg %p168
        %p382 = pneg %p165
        %p383 = pneg %p189
        %p384 = pneg %p186
        %p385 = pneg %p210
        %p386 = pneg %p207
        %p387 = pneg %p236
        %p388 = pneg %p233
        %s389 = sand.u32 %s223, 1
        %s390 = scalar_lea.sflag [#allocation8], %s389
        %s391 = sand.u32 %s223, 1
        %s392 = scalar_lea.vmem [#allocation12], %s391
        %p393 = scmp.lt.s32.totalorder %s39, 1
        %s394 = scalar_select %p393, %s39, 1
        %p395 = scmp.lt.s32.totalorder %s40, 1
        %s396 = scalar_select %p395, %s40, 1
        %s397 = smul.addr %s394, 2
        %s398 = sadd.s32 %s396, %s397
        %s399 = smul.addr %s398, 4
        %s400 = scalar_lea.vmem %s4, %s399
        %p401 = scmp.eq.s32.totalorder %s40, 0
        // Predicated region
        $region61: #{tpu_custom_call.1} parent=47 // pred_check
          %p402 = pneg %p401
        $region62: #{tpu_custom_call.1} parent=47 // pred_check_branch
          %404 = sbr.rel (%p402) target = $region64
        $region63: #{tpu_custom_call.1} parent=47 // pred_region
          %405 = vst [vmem:[#allocation2] sm:$0x1] 0.0
        $region64: #{tpu_custom_call.1} parent=47 // pred_fallthru
          _
        %s406 = sld [smem:[#allocation4 + %s39]]
        %s407 = sld [smem:[#allocation5 + %s39]]
        %v408 = vld [vmem:[%s346] sm:$0xf]
        %v409 = vld [vmem:[%s400] sm:$0xf]
        %v410 = vstv %s406
        %v411 = vmul.f32 %v410, %v408
        %v412 = vstv %s407
        %v413 = vmul.f32 %v412, %v409
        %v414 = vadd.f32 %v411, %v413
        %v415 = vld [vmem:[#allocation11] sm:$0xf]
        %v416 = vld [vmem:[%s337] sm:$0xf]
        %v417 = vld [vmem:[%s6] sm:$0xf]
        %vm418 = vcmask 31744
        %v420 = vsel %vm418, %v417, 0
        %vm422 = vcmask 1043456
        %v424 = vsel %vm422, %v414, 0
        %426 = vmatprep.subr.mxu0 0.0
        %427 = vmatpush1.msra.mxu0 0.0
        %428 = vmatprep.subr.mxu0 0.0
        %429 = vmatpush1.msra.mxu0 0.0
        %430 = vmatprep.subr.mxu0 0.0
        %431 = vmatpush1.msra.mxu0 0.0
        %432 = vmatprep.subr.mxu0 0.0
        %433 = vmatpush1.msra.mxu0 0.0
        %434 = vmatprep.subr.mxu0 0.0
        %435 = vmatpush1.msra.mxu0 0.0
        %436 = vmatprep.subr.mxu0 0.0
        %437 = vmatpush1.msra.mxu0 0.0
        %438 = vmatprep.subr.mxu0 0.0
        %439 = vmatpush1.msra.mxu0 0.0
        %440 = vmatprep.subr.mxu0 0.0
        %441 = vmatpush1.msra.mxu0 0.0
        %442 = vmatprep.subr.mxu0 0.0
        %443 = vmatpush1.msra.mxu0 0.0
        %444 = vmatprep.subr.mxu0 0.0
        %445 = vmatpush1.msra.mxu0 0.0
        %446 = vmatprep.subr.mxu0 0.0
        %447 = vmatpush1.msra.mxu0 0.0
        %448 = vmatprep.subr.mxu0 0.0
        %449 = vmatpush1.msra.mxu0 0.0
        %450 = vmatprep.subr.mxu0 0.0
        %451 = vmatpush1.msra.mxu0 0.0
        %452 = vmatprep.subr.mxu0 0.0
        %453 = vmatpush1.msra.mxu0 0.0
        %454 = vmatprep.subr.mxu0 0.0
        %455 = vmatpush1.msra.mxu0 0.0
        %456 = vmatprep.subr.mxu0 0.0
        %457 = vmatpush1.msra.mxu0 %v424
        %458 = vmatprep.subr.mxu0 0.0
        %459 = vmatpush2.msra.mxu0 0.0
        %460 = vmatprep.subr.mxu0 0.0
        %461 = vmatpush2.msra.mxu0 0.0
        %462 = vmatprep.subr.mxu0 0.0
        %463 = vmatpush2.msra.mxu0 0.0
        %464 = vmatprep.subr.mxu0 0.0
        %465 = vmatpush2.msra.mxu0 0.0
        %466 = vmatprep.subr.mxu0 0.0
        %467 = vmatpush2.msra.mxu0 0.0
        %468 = vmatprep.subr.mxu0 0.0
        %469 = vmatpush2.msra.mxu0 0.0
        %470 = vmatprep.subr.mxu0 0.0
        %471 = vmatpush2.msra.mxu0 0.0
        %472 = vmatprep.subr.mxu0 0.0
        %473 = vmatpush2.msra.mxu0 0.0
        %474 = vmatprep.subr.mxu0 0.0
        %475 = vmatpush2.msra.mxu0 0.0
        %476 = vmatprep.subr.mxu0 0.0
        %477 = vmatpush2.msra.mxu0 0.0
        %478 = vmatprep.subr.mxu0 0.0
        %479 = vmatpush2.msra.mxu0 0.0
        %480 = vmatprep.subr.mxu0 0.0
        %481 = vmatpush2.msra.mxu0 0.0
        %482 = vmatprep.subr.mxu0 0.0
        %483 = vmatpush2.msra.mxu0 0.0
        %484 = vmatprep.subr.mxu0 0.0
        %485 = vmatpush2.msra.mxu0 0.0
        %486 = vmatprep.subr.mxu0 0.0
        %487 = vmatpush2.msra.mxu0 0.0
        %488 = vmatprep.subr.mxu0 0.0
        %489 = vmatpush2.msra.mxu0 0.0
        %490 = vmatprep.mubr.f32.mxu0 0.0
        %491 = vmatmul.mubr.f32.gmra.mxu0 %v420
        %v492 = vpop.f32.mrf.mxu0
        %v493 = vadd.f32 0.0, %v492
        %v494 = vpop.f32.mrf.mxu0
        %495 = vdwg.mxu0
        %v497 = vsel %vm418, %v415, 0
        %v500 = vsel %vm422, %v416, 0
        %502 = vmatprep.subr.mxu0 0.0
        %503 = vmatpush1.msra.mxu0 0.0
        %504 = vmatprep.subr.mxu0 0.0
        %505 = vmatpush1.msra.mxu0 0.0
        %506 = vmatprep.subr.mxu0 0.0
        %507 = vmatpush1.msra.mxu0 0.0
        %508 = vmatprep.subr.mxu0 0.0
        %509 = vmatpush1.msra.mxu0 0.0
        %510 = vmatprep.subr.mxu0 0.0
        %511 = vmatpush1.msra.mxu0 0.0
        %512 = vmatprep.subr.mxu0 0.0
        %513 = vmatpush1.msra.mxu0 0.0
        %514 = vmatprep.subr.mxu0 0.0
        %515 = vmatpush1.msra.mxu0 0.0
        %516 = vmatprep.subr.mxu0 0.0
        %517 = vmatpush1.msra.mxu0 0.0
        %518 = vmatprep.subr.mxu0 0.0
        %519 = vmatpush1.msra.mxu0 0.0
        %520 = vmatprep.subr.mxu0 0.0
        %521 = vmatpush1.msra.mxu0 0.0
        %522 = vmatprep.subr.mxu0 0.0
        %523 = vmatpush1.msra.mxu0 0.0
        %524 = vmatprep.subr.mxu0 0.0
        %525 = vmatpush1.msra.mxu0 0.0
        %526 = vmatprep.subr.mxu0 0.0
        %527 = vmatpush1.msra.mxu0 0.0
        %528 = vmatprep.subr.mxu0 0.0
        %529 = vmatpush1.msra.mxu0 0.0
        %530 = vmatprep.subr.mxu0 0.0
        %531 = vmatpush1.msra.mxu0 0.0
        %532 = vmatprep.subr.mxu0 0.0
        %533 = vmatpush1.msra.mxu0 %v500
        %534 = vmatprep.subr.mxu0 0.0
        %535 = vmatpush2.msra.mxu0 0.0
        %536 = vmatprep.subr.mxu0 0.0
        %537 = vmatpush2.msra.mxu0 0.0
        %538 = vmatprep.subr.mxu0 0.0
        %539 = vmatpush2.msra.mxu0 0.0
        %540 = vmatprep.subr.mxu0 0.0
        %541 = vmatpush2.msra.mxu0 0.0
        %542 = vmatprep.subr.mxu0 0.0
        %543 = vmatpush2.msra.mxu0 0.0
        %544 = vmatprep.subr.mxu0 0.0
        %545 = vmatpush2.msra.mxu0 0.0
        %546 = vmatprep.subr.mxu0 0.0
        %547 = vmatpush2.msra.mxu0 0.0
        %548 = vmatprep.subr.mxu0 0.0
        %549 = vmatpush2.msra.mxu0 0.0
        %550 = vmatprep.subr.mxu0 0.0
        %551 = vmatpush2.msra.mxu0 0.0
        %552 = vmatprep.subr.mxu0 0.0
        %553 = vmatpush2.msra.mxu0 0.0
        %554 = vmatprep.subr.mxu0 0.0
        %555 = vmatpush2.msra.mxu0 0.0
        %556 = vmatprep.subr.mxu0 0.0
        %557 = vmatpush2.msra.mxu0 0.0
        %558 = vmatprep.subr.mxu0 0.0
        %559 = vmatpush2.msra.mxu0 0.0
        %560 = vmatprep.subr.mxu0 0.0
        %561 = vmatpush2.msra.mxu0 0.0
        %562 = vmatprep.subr.mxu0 0.0
        %563 = vmatpush2.msra.mxu0 0.0
        %564 = vmatprep.subr.mxu0 0.0
        %565 = vmatpush2.msra.mxu0 0.0
        %566 = vmatprep.mubr.f32.mxu0 0.0
        %567 = vmatmul.mubr.f32.gmra.mxu0 %v497
        %v568 = vpop.f32.mrf.mxu0
        %v569 = vadd.f32 %v493, %v568
        %v570 = vpop.f32.mrf.mxu0
        %571 = vdwg.mxu0
        %v572 = vld [vmem:[%s7] sm:$0xf]
        %574 = vset.pattern.permute.xlu0 0
        %575 = vperm.xlu0 %574, %v572
        %v576 = vpop.permute.xlu0 %575
        %v578 = vadd.f32 %v569, %v576
        %v579 = vld [vmem:[%s8] sm:$0xf]
        %v580 = vmul.f32 %v410, %v579
        %582 = vset.pattern.permute.xlu0 0
        %583 = vperm.xlu0 %582, %v580
        %v584 = vpop.permute.xlu0 %583
        %v586 = vadd.f32 %v578, %v584
        %v587 = vsub.f32 %v409, %v586
        %v588 = vld [vmem:[#allocation2] sm:$0x1]
        %v589 = vmul.f32 %v587, %v587
        %v590 = vsel %vm422, %v589, 0.0
        %591 = vadd.xlane.f32.xlu0 %v590
        %v592 = vpop.xlane.xlu0 %591
        %v593 = vrot.slane %v592, 4
        %v594 = vadd.f32 %v592, %v593
        %v595 = vrot.slane %v594, 2
        %v596 = vadd.f32 %v594, %v595
        %v597 = vrot.slane %v596, 1
        %v598 = vadd.f32 %v596, %v597
        %s599 = vtos %v598
        %v600 = vstv %s599
        %v601 = vadd.f32 %v588, %v600
        %602 = vst [vmem:[#allocation2] sm:$0x1] %v601
        %p603 = scmp.eq.s32.totalorder %s40, 1
        // Predicated region
        $region65: #{tpu_custom_call.1} parent=47 // pred_check
          %p604 = pneg %p603
        $region66: #{tpu_custom_call.1} parent=47 // pred_check_branch
          %606 = sbr.rel (%p604) target = $region68
        $region67: #{tpu_custom_call.1} parent=47 // pred_region
          %v607 = vld [vmem:[#allocation2] sm:$0x1]
          %608 = vst [vmem:[%s392] sm:$0x1] %v607
        $region68: #{tpu_custom_call.1} parent=47 // pred_fallthru
          _
        %s609 = sand.u32 %s223, 1
        %s610 = scalar_lea.sflag [#allocation8], %s609
        %s611 = sand.u32 %s223, 1
        %s612 = scalar_lea.vmem [#allocation12], %s611
        // Predicated region
        $region69: #{tpu_custom_call.1} parent=47 // pred_check
          %p613 = pneg %p233
        $region70: #{tpu_custom_call.1} parent=47 // pred_check_branch
          %615 = sbr.rel (%p613) target = $region72
        $region71: #{tpu_custom_call.1} parent=47 // pred_region
          %s617 = ssub.s32 16, 16
          %618 = vsyncadd %s610, %s617
          %s619 = smul.addr %s39, 16
          %s620 = scalar_lea.hbm %s9, %s619
          %s622 = sshll.u32 %s612, 4
          %s623 = int_to_ptr.vmem [resolvable:$true] %s622
          %625 = dma.vmem_to_hbm [thread:$0]  %s623, 16, %s620, %s610
        $region72: #{tpu_custom_call.1} parent=47 // pred_fallthru
          _
      $region48: #{tpu_custom_call.1} parent=5 // pred_fallthru
        _
      %p626 = scmp.le.s32.totalorder 2, %s30
      // Predicated region
      $region73: #{tpu_custom_call.1} parent=5 // pred_check
        %p627 = pneg %p626
      $region74: #{tpu_custom_call.1} parent=5 // pred_check_branch
        %629 = sbr.rel (%p627) target = $region76
      $region75: #{tpu_custom_call.1} parent=5 // pred_region
        %s630 = ssub.s32 %s30, 2
        // Predicated region
        $region77: #{tpu_custom_call.1} parent=75 // pred_check
          %p631 = pneg %p239
        $region78: #{tpu_custom_call.1} parent=75 // pred_check_branch
          %633 = sbr.rel (%p631) target = $region80
        $region79: #{tpu_custom_call.1} parent=75 // pred_region
          %s634 = sand.u32 %s224, 1
          %s635 = scalar_lea.sflag [#allocation8], %s634
          %s636 = sand.u32 %s224, 1
          %s637 = scalar_lea.vmem [#allocation12], %s636
          %638 = dma.done %s635, 16
        $region80: #{tpu_custom_call.1} parent=75 // pred_fallthru
          _
      $region76: #{tpu_custom_call.1} parent=5 // pred_fallthru
        _
    $region6: #{tpu_custom_call.1} parent=1 // loop_footer
      %s34 = sadd.s32 1, %s30
    $region7: #{tpu_custom_call.1} parent=1 // loop_footer_branch
      %29 = sbr.rel target = $region3
    $region8: #{tpu_custom_call.1} parent=1 // loop_exit
      _
    %639 = vsyncpa [#allocation7], 1
    %s640 = scalar_lea.sflag [#allocation7], 1
    %641 = vsyncpa %s640, 1
    %642 = vsyncpa [#allocation10], 1
    %s643 = scalar_lea.sflag [#allocation10], 1
    %644 = vsyncpa %s643, 1
    %645 = vsyncpa [#allocation8], 1
    %s646 = scalar_lea.sflag [#allocation8], 1
    %647 = vsyncpa %s646, 1

</llo_original>
